<compile_context>
chip_gen: v5e
topology: v5e:2x2
jax: 0.10.0
libtpu: 0.0.40
codegen_flags: <defaults>
</compile_context>

<pallas_src>
import math

import jax
import jax.numpy as jnp
from jax import lax
from jax.experimental import pallas as pl
from jax.experimental.pallas import tpu as pltpu


def _round_up(x, m):
    return (x + m - 1) // m * m


# --------------------------------------------------------------------------
# Pallas kernel: one MC sample per grid step; BS folded into the matmul N dim.
# --------------------------------------------------------------------------
def _make_conv_kernel(C_in, k, W, HW, BS, N, LX, mxu_dtype):
    offsets = [(ky, kx) for ky in range(k) for kx in range(k)]  # slab row band

    def kernel(x_ref, w_ref, b_ref, o_ref, xpad_ref, slab_ref):
        # x_ref   : (1, BS, C_in, HW)     f32  raw per-MC activations (no pad)
        # w_ref   : (1, C_out, k*k*C_in)  f32  inner order (ky, kx, c)
        # b_ref   : (1, C_out, 1)         f32
        # o_ref   : (1, C_out, N)         N = BS*HW lane-dense wide output
        # xpad_ref: (C_in, LX)            f32 scratch (batch-concat + zero tail)
        # slab_ref: (k*k*C_in, N)         f32 scratch (in-VMEM im2col)

        # 1) batch-concatenate the activation rows along lanes (aligned stores).
        for b in range(BS):
            xpad_ref[:, b * HW:(b + 1) * HW] = x_ref[0, b]
        if LX > N:  # zero the tail touched only by cropped columns
            xpad_ref[:, N:] = jnp.zeros((C_in, LX - N), jnp.float32)

        # 2) in-VMEM im2col: k*k shifted (C_in, N) copies.  Lane starts are
        #    unaligned; could be swapped for aligned loads + pltpu.roll if the
        #    vld slot ever binds (it doesn't at these shapes).
        for idx, (ky, kx) in enumerate(offsets):
            off = ky * W + kx
            slab_ref[idx * C_in:(idx + 1) * C_in, :] = xpad_ref[:, off:off + N]

        # 3) ONE fused MXU matmul (K = k*k*C_in), f32 accumulate, f32 bias add.
        acc = jnp.dot(w_ref[0].astype(mxu_dtype),
                      slab_ref[...].astype(mxu_dtype),
                      preferred_element_type=jnp.float32)
        o_ref[0] = (acc + b_ref[0]).astype(o_ref.dtype)

    return kernel


def sivi_grouped_conv(x, w_samp, b_samp, *, mxu_dtype=jnp.bfloat16,
                      out_dtype=jnp.float32):
    """Grouped (groups=MC) valid conv, stride=1 (== F.conv2d(..., groups=num_MC)).

    x:      [MC, BS, C_in, H, W]    float32
    w_samp: [MC, C_out, C_in, k, k]
    b_samp: [MC, C_out]
    returns [MC, BS, C_out, Hout, Wout] in out_dtype
    """
    MC, BS, C_in, H, W = x.shape
    _, C_out, _, k, _ = w_samp.shape
    Hout, Wout = H - k + 1, W - k + 1
    HW = H * W
    KKC = k * k * C_in
    N = BS * HW                               # matmul N / wide-output lanes
    off_max = (k - 1) * W + (k - 1)
    LX = _round_up(N + off_max, 128)          # padded scratch row length

    x_flat = x.reshape(MC, BS, C_in, HW)      # free reshape, no pad / cast pass
    # weight -> [MC, C_out, (ky, kx, c)] to match the slab row order
    w_mat = w_samp.transpose(0, 1, 3, 4, 2).reshape(MC, C_out, KKC)
    w_mat = w_mat.astype(jnp.float32)
    b_mat = b_samp.reshape(MC, C_out, 1).astype(jnp.float32)

    kernel = _make_conv_kernel(C_in, k, W, HW, BS, N, LX, mxu_dtype)

    out_wide = pl.pallas_call(
        kernel,
        out_shape=jax.ShapeDtypeStruct((MC, C_out, N), out_dtype),
        grid_spec=pltpu.PrefetchScalarGridSpec(
            num_scalar_prefetch=0,
            grid=(MC,),
            in_specs=[
                pl.BlockSpec((1, BS, C_in, HW), lambda m: (m, 0, 0, 0)),
                pl.BlockSpec((1, C_out, KKC), lambda m: (m, 0, 0)),
                pl.BlockSpec((1, C_out, 1), lambda m: (m, 0, 0)),
            ],
            out_specs=pl.BlockSpec((1, C_out, N), lambda m: (m, 0, 0)),
            scratch_shapes=[
                pltpu.VMEM((C_in, LX), jnp.float32),
                pltpu.VMEM((KKC, N), jnp.float32),
            ],
        ),
        compiler_params=pltpu.CompilerParams(
            dimension_semantics=("parallel",),   # MC even -> both v7x TCs busy
            vmem_limit_bytes=32 * 1024 * 1024,   # safe on v5e/v6e/v7x
        ),
    )(x_flat, w_mat, b_mat)

    # Lazy crop + layout fix: one XLA slice/transpose that fuses into the
    # consumer under jit.  Wide column n = b*HW + h*W + w; valid h<Hout, w<Wout.
    out = out_wide.reshape(MC, C_out, BS, H, W)[..., :Hout, :Wout]
    return out.transpose(0, 2, 1, 3, 4)


# --------------------------------------------------------------------------
# SIVI hypernetwork + reparameterization + KL (tiny parameter-generation work)
# TODO(synk): the SIVI hypernetwork MLP, Normal rsample and KL term are kept as
# plain-JAX glue (a few KB of params; negligible vs the conv) rather than
# dedicated Pallas kernels.
# --------------------------------------------------------------------------
def sivi_net_apply(params, noise):
    h = jax.nn.relu(noise @ params["w1"] + params["b1"])
    h = jax.nn.relu(h @ params["w2"] + params["b2"])
    return h @ params["w3"] + params["b3"]


def conv_sivi_forward(params, x, prior, key, *, dim_in, dim_out, kernel_size,
                      prior_sigma=1.0, mxu_dtype=jnp.bfloat16):
    """Mirrors ConvSIVILayer.forward; returns ((out, None, prior), aux)."""
    MC = x.shape[0]
    k = kernel_size
    n_w = dim_in * dim_out * k * k * 2

    k_noise, k_w, k_b = jax.random.split(key, 3)
    noise = jax.random.normal(k_noise, (MC, params["w1"].shape[0]), jnp.float32)
    sivi_out = sivi_net_apply(params, noise)                 # [MC, dim_params]

    w_part, b_part = sivi_out[:, :n_w], sivi_out[:, n_w:]
    w_mu, w_logsigma = jnp.split(w_part, 2, axis=-1)
    b_mu, b_logsigma = jnp.split(b_part, 2, axis=-1)

    w_mu = w_mu.reshape(MC, dim_out, dim_in, k, k)
    w_std = jax.nn.softplus(w_logsigma.reshape(MC, dim_out, dim_in, k, k))
    b_mu = b_mu.reshape(MC, dim_out)
    b_std = jax.nn.softplus(b_logsigma).reshape(MC, dim_out)

    # Normal(...).rsample()
    w = w_mu + jax.random.normal(k_w, w_mu.shape, w_mu.dtype) * w_std
    b = b_mu + jax.random.normal(k_b, b_mu.shape, b_mu.dtype) * b_std

    out = sivi_grouped_conv(x, w, b, mxu_dtype=mxu_dtype)

    # KL( N(0, prior_sigma) || Normal(w_mu, w_std) ).mean(dim=0).sum()
    kl = (jnp.log(w_std / prior_sigma)
          + (prior_sigma ** 2 + w_mu ** 2) / (2.0 * w_std ** 2) - 0.5)
    kl = kl.reshape(MC * dim_out, dim_in, k, k).mean(axis=0).sum()
    prior = prior + kl

    return (out, None, prior), {"w": w, "b": b}


# --------------------------------------------------------------------------
def _init_linear(key, fan_in, fan_out):
    # Same scheme as torch.nn.Linear default init (not bit-identical RNG).
    kw, kb = jax.random.split(key)
    bound = 1.0 / math.sqrt(fan_in)
    w = jax.random.uniform(kw, (fan_in, fan_out), jnp.float32, -bound, bound)
    b = jax.random.uniform(kb, (fan_out,), jnp.float32, -bound, bound)
    return w, b


if __name__ == "__main__":
    MC, BS = 2, 2
    C_in, C_out, ksz = 4, 8, 3
    H = W = 16
    noise_dim = 10
    prior_sigma = 1.0

    dim_params = C_in * C_out * ksz * ksz * 2 + C_out * 2
    num_hidden = min(dim_params, (noise_dim + dim_params) // 2)

    key = jax.random.PRNGKey(0)
    k_x, k_p1, k_p2, k_p3, k_fwd = jax.random.split(key, 5)

    w1, b1 = _init_linear(k_p1, noise_dim, num_hidden)
    w2, b2 = _init_linear(k_p2, num_hidden, num_hidden)
    w3, b3 = _init_linear(k_p3, num_hidden, dim_params)
    params = dict(w1=w1, b1=b1, w2=w2, b2=b2, w3=w3, b3=b3)

    x = jax.random.normal(k_x, (MC, BS, C_in, H, W), jnp.float32)
    prior0 = jnp.float32(0.0)

    (out, _none, prior), aux = conv_sivi_forward(
        params, x, prior0, k_fwd,
        dim_in=C_in, dim_out=C_out, kernel_size=ksz,
        prior_sigma=prior_sigma, mxu_dtype=jnp.bfloat16)
    out = jax.block_until_ready(out)
    jax.block_until_ready(prior)

    # ---- reference: lax grouped conv on the SAME bf16-rounded operands ----
    w_s, b_s = aux["w"], aux["b"]
    Hout, Wout = H - ksz + 1, W - ksz + 1
    xr = x.astype(jnp.bfloat16).astype(jnp.float32)
    wr = w_s.astype(jnp.bfloat16).astype(jnp.float32)
    x_ref_in = xr.transpose(1, 0, 2, 3, 4).reshape(BS, MC * C_in, H, W)
    w_ref_in = wr.reshape(MC * C_out, C_in, ksz, ksz)
    ref = lax.conv_general_dilated(
        x_ref_in, w_ref_in, (1, 1), [(0, 0), (0, 0)],
        dimension_numbers=("NCHW", "OIHW", "NCHW"),
        feature_group_count=MC, precision=lax.Precision.HIGHEST)
    ref = ref + b_s.reshape(1, MC * C_out, 1, 1)
    ref = ref.reshape(BS, MC, C_out, Hout, Wout).transpose(1, 0, 2, 3, 4)

    assert out.shape == (MC, BS, C_out, Hout, Wout), out.shape
    max_err = float(jnp.max(jnp.abs(out - ref)))
    assert jnp.allclose(out, ref, atol=1e-3, rtol=1e-3), max_err
    print("KERNEL_OK")
</pallas_src>

<mosaic_0001>
module attributes {stable_mosaic.version = 11 : i64} {
  func.func @kernel(%arg0: i32, %arg1: memref<1x2x4x256xf32, #tpu.memory_space<vmem>>, %arg2: memref<1x8x36xf32, #tpu.memory_space<vmem>>, %arg3: memref<1x8x1xf32, #tpu.memory_space<vmem>>, %arg4: memref<1x8x512xf32, #tpu.memory_space<vmem>>, %arg5: memref<4x640xf32, #tpu.memory_space<vmem>>, %arg6: memref<36x512xf32, #tpu.memory_space<vmem>>) attributes {dimension_semantics = [#tpu.dimension_semantics<parallel>], iteration_bounds = array<i64: 2>, scalar_prefetch = 0 : i64, scratch_operands = 2 : i64, tpu.core_type = #tpu.core_type<tc>, window_params = [{transform_indices = @transform_0, window_bounds = array<i64: 1, 2, 4, 256>}, {transform_indices = @transform_1, window_bounds = array<i64: 1, 8, 36>}, {transform_indices = @transform_2, window_bounds = array<i64: 1, 8, 1>}, {transform_indices = @transform_3, window_bounds = array<i64: 1, 8, 512>}]} {
    %c0 = arith.constant 0 : index
    %c0_0 = arith.constant 0 : index
    %c0_1 = arith.constant 0 : index
    %c0_2 = arith.constant 0 : index
    %0 = vector.load %arg1[%c0, %c0_0, %c0_1, %c0_2] : memref<1x2x4x256xf32, #tpu.memory_space<vmem>>, vector<1x1x4x256xf32>
    %1 = vector.shape_cast %0 : vector<1x1x4x256xf32> to vector<4x256xf32>
    %c0_3 = arith.constant 0 : index
    %c0_4 = arith.constant 0 : index
    %2 = vector.load %arg5[%c0_3, %c0_4] : memref<4x640xf32, #tpu.memory_space<vmem>>, vector<4x256xf32>
    tpu.vector_store %arg5[%c0_3, %c0_4], %1 {strides = array<i32>} : memref<4x640xf32, #tpu.memory_space<vmem>>, vector<4x256xf32>,
    %c0_5 = arith.constant 0 : index
    %c1 = arith.constant 1 : index
    %c0_6 = arith.constant 0 : index
    %c0_7 = arith.constant 0 : index
    %3 = vector.load %arg1[%c0_5, %c1, %c0_6, %c0_7] : memref<1x2x4x256xf32, #tpu.memory_space<vmem>>, vector<1x1x4x256xf32>
    %4 = vector.shape_cast %3 : vector<1x1x4x256xf32> to vector<4x256xf32>
    %c0_8 = arith.constant 0 : index
    %c256 = arith.constant 256 : index
    %5 = vector.load %arg5[%c0_8, %c256] : memref<4x640xf32, #tpu.memory_space<vmem>>, vector<4x256xf32>
    tpu.vector_store %arg5[%c0_8, %c256], %4 {strides = array<i32>} : memref<4x640xf32, #tpu.memory_space<vmem>>, vector<4x256xf32>,
    %cst = arith.constant 0.000000e+00 : f32
    %6 = vector.broadcast %cst : f32 to vector<4x128xf32>
    %c0_9 = arith.constant 0 : index
    %c512 = arith.constant 512 : index
    %7 = vector.load %arg5[%c0_9, %c512] : memref<4x640xf32, #tpu.memory_space<vmem>>, vector<4x128xf32>
    tpu.vector_store %arg5[%c0_9, %c512], %6 {strides = array<i32>} : memref<4x640xf32, #tpu.memory_space<vmem>>, vector<4x128xf32>,
    %c0_10 = arith.constant 0 : index
    %c0_11 = arith.constant 0 : index
    %8 = vector.load %arg5[%c0_10, %c0_11] : memref<4x640xf32, #tpu.memory_space<vmem>>, vector<4x512xf32>
    %c0_12 = arith.constant 0 : index
    %c0_13 = arith.constant 0 : index
    %9 = vector.load %arg6[%c0_12, %c0_13] : memref<36x512xf32, #tpu.memory_space<vmem>>, vector<4x512xf32>
    tpu.vector_store %arg6[%c0_12, %c0_13], %8 {strides = array<i32>} : memref<36x512xf32, #tpu.memory_space<vmem>>, vector<4x512xf32>,
    %c0_14 = arith.constant 0 : index
    %c1_15 = arith.constant 1 : index
    %10 = vector.load %arg5[%c0_14, %c1_15] : memref<4x640xf32, #tpu.memory_space<vmem>>, vector<4x512xf32>
    %c4 = arith.constant 4 : index
    %c0_16 = arith.constant 0 : index
    %11 = vector.load %arg6[%c4, %c0_16] : memref<36x512xf32, #tpu.memory_space<vmem>>, vector<4x512xf32>
    tpu.vector_store %arg6[%c4, %c0_16], %10 {strides = array<i32>} : memref<36x512xf32, #tpu.memory_space<vmem>>, vector<4x512xf32>,
    %c0_17 = arith.constant 0 : index
    %c2 = arith.constant 2 : index
    %12 = vector.load %arg5[%c0_17, %c2] : memref<4x640xf32, #tpu.memory_space<vmem>>, vector<4x512xf32>
    %c8 = arith.constant 8 : index
    %c0_18 = arith.constant 0 : index
    %13 = vector.load %arg6[%c8, %c0_18] : memref<36x512xf32, #tpu.memory_space<vmem>>, vector<4x512xf32>
    tpu.vector_store %arg6[%c8, %c0_18], %12 {strides = array<i32>} : memref<36x512xf32, #tpu.memory_space<vmem>>, vector<4x512xf32>,
    %c0_19 = arith.constant 0 : index
    %c16 = arith.constant 16 : index
    %14 = vector.load %arg5[%c0_19, %c16] : memref<4x640xf32, #tpu.memory_space<vmem>>, vector<4x512xf32>
    %c12 = arith.constant 12 : index
    %c0_20 = arith.constant 0 : index
    %15 = vector.load %arg6[%c12, %c0_20] : memref<36x512xf32, #tpu.memory_space<vmem>>, vector<4x512xf32>
    tpu.vector_store %arg6[%c12, %c0_20], %14 {strides = array<i32>} : memref<36x512xf32, #tpu.memory_space<vmem>>, vector<4x512xf32>,
    %c0_21 = arith.constant 0 : index
    %c17 = arith.constant 17 : index
    %16 = vector.load %arg5[%c0_21, %c17] : memref<4x640xf32, #tpu.memory_space<vmem>>, vector<4x512xf32>
    %c16_22 = arith.constant 16 : index
    %c0_23 = arith.constant 0 : index
    %17 = vector.load %arg6[%c16_22, %c0_23] : memref<36x512xf32, #tpu.memory_space<vmem>>, vector<4x512xf32>
    tpu.vector_store %arg6[%c16_22, %c0_23], %16 {strides = array<i32>} : memref<36x512xf32, #tpu.memory_space<vmem>>, vector<4x512xf32>,
    %c0_24 = arith.constant 0 : index
    %c18 = arith.constant 18 : index
    %18 = vector.load %arg5[%c0_24, %c18] : memref<4x640xf32, #tpu.memory_space<vmem>>, vector<4x512xf32>
    %c20 = arith.constant 20 : index
    %c0_25 = arith.constant 0 : index
    %19 = vector.load %arg6[%c20, %c0_25] : memref<36x512xf32, #tpu.memory_space<vmem>>, vector<4x512xf32>
    tpu.vector_store %arg6[%c20, %c0_25], %18 {strides = array<i32>} : memref<36x512xf32, #tpu.memory_space<vmem>>, vector<4x512xf32>,
    %c0_26 = arith.constant 0 : index
    %c32 = arith.constant 32 : index
    %20 = vector.load %arg5[%c0_26, %c32] : memref<4x640xf32, #tpu.memory_space<vmem>>, vector<4x512xf32>
    %c24 = arith.constant 24 : index
    %c0_27 = arith.constant 0 : index
    %21 = vector.load %arg6[%c24, %c0_27] : memref<36x512xf32, #tpu.memory_space<vmem>>, vector<4x512xf32>
    tpu.vector_store %arg6[%c24, %c0_27], %20 {strides = array<i32>} : memref<36x512xf32, #tpu.memory_space<vmem>>, vector<4x512xf32>,
    %c0_28 = arith.constant 0 : index
    %c33 = arith.constant 33 : index
    %22 = vector.load %arg5[%c0_28, %c33] : memref<4x640xf32, #tpu.memory_space<vmem>>, vector<4x512xf32>
    %c28 = arith.constant 28 : index
    %c0_29 = arith.constant 0 : index
    %23 = vector.load %arg6[%c28, %c0_29] : memref<36x512xf32, #tpu.memory_space<vmem>>, vector<4x512xf32>
    tpu.vector_store %arg6[%c28, %c0_29], %22 {strides = array<i32>} : memref<36x512xf32, #tpu.memory_space<vmem>>, vector<4x512xf32>,
    %c0_30 = arith.constant 0 : index
    %c34 = arith.constant 34 : index
    %24 = vector.load %arg5[%c0_30, %c34] : memref<4x640xf32, #tpu.memory_space<vmem>>, vector<4x512xf32>
    %c32_31 = arith.constant 32 : index
    %c0_32 = arith.constant 0 : index
    %25 = vector.load %arg6[%c32_31, %c0_32] : memref<36x512xf32, #tpu.memory_space<vmem>>, vector<4x512xf32>
    tpu.vector_store %arg6[%c32_31, %c0_32], %24 {strides = array<i32>} : memref<36x512xf32, #tpu.memory_space<vmem>>, vector<4x512xf32>,
    %c0_33 = arith.constant 0 : index
    %c0_34 = arith.constant 0 : index
    %c0_35 = arith.constant 0 : index
    %26 = vector.load %arg2[%c0_33, %c0_34, %c0_35] : memref<1x8x36xf32, #tpu.memory_space<vmem>>, vector<1x8x36xf32>
    %27 = vector.shape_cast %26 : vector<1x8x36xf32> to vector<8x36xf32>
    %28 = arith.truncf %27 : vector<8x36xf32> to vector<8x36xbf16>
    %c0_36 = arith.constant 0 : index
    %c0_37 = arith.constant 0 : index
    %29 = vector.load %arg6[%c0_36, %c0_37] : memref<36x512xf32, #tpu.memory_space<vmem>>, vector<36x512xf32>
    %30 = arith.truncf %29 : vector<36x512xf32> to vector<36x512xbf16>
    %cst_38 = arith.constant dense<0.000000e+00> : vector<8x512xf32>
    %31 = tpu.matmul %28, %30, %cst_38 {dimension_numbers = #tpu.dot_dimension_numbers<[1], [0], [0], [1], [0, 0, 1, 1], [], []>} : vector<8x36xbf16>, vector<36x512xbf16>, vector<8x512xf32> -> vector<8x512xf32>
    %c0_39 = arith.constant 0 : index
    %c0_40 = arith.constant 0 : index
    %c0_41 = arith.constant 0 : index
    %32 = vector.load %arg3[%c0_39, %c0_40, %c0_41] : memref<1x8x1xf32, #tpu.memory_space<vmem>>, vector<1x8x1xf32>
    %33 = vector.shape_cast %32 : vector<1x8x1xf32> to vector<8x1xf32>
    %34 = vector.broadcast %33 : vector<8x1xf32> to vector<8x512xf32>
    %35 = arith.addf %31, %34 : vector<8x512xf32>
    %c0_42 = arith.constant 0 : index
    %c0_43 = arith.constant 0 : index
    %c0_44 = arith.constant 0 : index
    %36 = vector.load %arg4[%c0_42, %c0_43, %c0_44] : memref<1x8x512xf32, #tpu.memory_space<vmem>>, vector<1x8x512xf32>
    %37 = vector.shape_cast %36 : vector<1x8x512xf32> to vector<8x512xf32>
    %38 = vector.shape_cast %35 : vector<8x512xf32> to vector<1x8x512xf32>
    tpu.vector_store %arg4[%c0_42, %c0_43, %c0_44], %38 {strides = array<i32>} : memref<1x8x512xf32, #tpu.memory_space<vmem>>, vector<1x8x512xf32>,
    return
  }
  func.func @transform_0(%arg0: i32) -> (i32, i32, i32, i32) {
    %c0_i32 = arith.constant 0 : i32
    %c0_i32_0 = arith.constant 0 : i32
    %c0_i32_1 = arith.constant 0 : i32
    %c0_i32_2 = arith.constant 0 : i32
    return %arg0, %c0_i32, %c0_i32_0, %c0_i32_1 : i32, i32, i32, i32
  }
  func.func @transform_1(%arg0: i32) -> (i32, i32, i32) {
    %c0_i32 = arith.constant 0 : i32
    %c0_i32_0 = arith.constant 0 : i32
    %c0_i32_1 = arith.constant 0 : i32
    return %arg0, %c0_i32, %c0_i32_0 : i32, i32, i32
  }
  func.func @transform_2(%arg0: i32) -> (i32, i32, i32) {
    %c0_i32 = arith.constant 0 : i32
    %c0_i32_0 = arith.constant 0 : i32
    %c0_i32_1 = arith.constant 0 : i32
    return %arg0, %c0_i32, %c0_i32_0 : i32, i32, i32
  }
  func.func @transform_3(%arg0: i32) -> (i32, i32, i32) {
    %c0_i32 = arith.constant 0 : i32
    %c0_i32_0 = arith.constant 0 : i32
    %c0_i32_1 = arith.constant 0 : i32
    return %arg0, %c0_i32, %c0_i32_0 : i32, i32, i32
  }
}

</mosaic_0001>

<llo_original>
// kernel: tpu_custom_call.1
$region0: #{tpu_custom_call.1}
  #allocation0 [shape = 'u32[]', space=smem, size = 0x4, offset = 0x4, fixed_abs, tag = 'smem constant byte address 0x4 - core index']
  #allocation1 [shape = 'u32[72,128]{1,0:T(1,128)}', space=vmem, size = 0x9000, scoped, tag = 'internal scratch']
  #allocation2 [shape = 'f32[4,640]{1,0:T(4,128)}', space=vmem, size = 0x2800, scoped, tag = 'scratch operand']
  #allocation3 [shape = 'f32[36,512]{1,0:T(8,128)}', space=vmem, size = 0x14000, scoped, tag = 'scratch operand']
  %s0 = inlined_call_operand.hbm [shape: f32[2,2,4,256], index: 0, kind: input, shape index: {}]
  %s1 = inlined_call_operand.vmem [shape: f32[2,8,36], index: 1, kind: input, shape index: {}]
  %s2 = inlined_call_operand.vmem [shape: f32[2,8,1], index: 2, kind: input, shape index: {}]
  %s3 = inlined_call_operand.hbm [shape: f32[2,8,512], index: 3, kind: output, shape index: {}]
  %s4 = sld [smem:[#allocation0]]
  $region49: #{tpu_custom_call.1} parent=0
    _
  %s6 = ssub.s32 1, %s4
  %s7 = scalar_select 0, %s6, %s4
  $region1: #{tpu_custom_call.1} parent=0
    #allocation4 [shape = 'u8[16384]{0}', space=vmem, size = 0x4000, scoped, tag = 'input window, operand 0']
    #allocation5 [shape = 's32[2]{0}', space=sflag, size = 0x8, scoped, tag = 'scoped memory for tpu_custom_call.1']
    #allocation6 [shape = 's32[2]{0}', space=sflag, size = 0x8, scoped, tag = 'scoped memory for tpu_custom_call.1']
    #allocation7 [shape = 'u8[32768]{0}', space=vmem, size = 0x8000, scoped, tag = 'output window, operand 0']
    %8 = vsyncpa [#allocation5], 0
    %s9 = scalar_lea.sflag [#allocation5], 1
    %10 = vsyncpa %s9, 0
    %11 = vsyncpa [#allocation6], 0
    %s12 = scalar_lea.sflag [#allocation6], 1
    %13 = vsyncpa %s12, 0
    loop: start=0, step=1, limit=4
    $region2: #{tpu_custom_call.1} parent=1 // loop_pre_header
      _
    $region3: #{tpu_custom_call.1} parent=1 // loop_header
      %s15 = sphi 0, %s19
      %p16 = scmp.ge.s32.totalorder %s15, 4
      %s25 = sphi 0, %s27
      %s28 = sphi 0, %s25
      %s29 = sphi 0, %s28
      %s45 = sphi 0, %s29
      %s51 = sphi 0, %s53
      %s54 = sphi 0, %s51
      %s55 = sphi 0, %s54
      %s71 = sphi 0, %s55
      %s77 = sphi 0, %s79
      %s80 = sphi 0, %s77
      %s81 = sphi 0, %s80
      %s97 = sphi 0, %s81
      %s103 = sphi 0, %s105
      %s106 = sphi 0, %s103
      %s107 = sphi 0, %s106
      %s123 = sphi 0, %s107
    $region4: #{tpu_custom_call.1} parent=1 // loop_header_branch
      %18 = sbr.rel (%p16) target = $region8
    $region5: #{tpu_custom_call.1} parent=1 // loop_body
      %s20 = ssub.s32 %s15, 1
      %s21 = ssub.s32 %s15, 2
      %s22 = sadd.s32 %s15, 1
      %s23 = ssub.s32 %s15, %s22
      %p24 = scmp.eq.s32.totalorder %s23, 0
      %s26 = sadd.s32 %s25, 1
      %s27 = scalar_select %p24, %s25, %s26
      %p30 = pneg %p24
      %p31 = scmp.eq.s32.totalorder %s15, 1
      %p32 = por %p30, %p31
      %p33 = scmp.ne.s32.totalorder %s25, %s28
      %p34 = scmp.eq.s32.totalorder %s15, 0
      %p35 = por %p33, %p34
      %p36 = scmp.ne.s32.totalorder %s25, %s28
      %p37 = scmp.eq.s32.totalorder %s20, 1
      %p38 = por %p36, %p37
      %p39 = scmp.ne.s32.totalorder %s28, %s29
      %p40 = scmp.eq.s32.totalorder %s20, 0
      %p41 = por %p39, %p40
      %p42 = scmp.ne.s32.totalorder %s28, %s29
      %p43 = scmp.eq.s32.totalorder %s21, 1
      %p44 = por %p42, %p43
      %p46 = scmp.ne.s32.totalorder %s29, %s45
      %p47 = scmp.eq.s32.totalorder %s21, 0
      %p48 = por %p46, %p47
      %s49 = ssub.s32 %s15, %s22
      %p50 = scmp.eq.s32.totalorder %s49, 0
      %s52 = sadd.s32 %s51, 1
      %s53 = scalar_select %p50, %s51, %s52
      %p56 = pneg %p50
      %p57 = scmp.eq.s32.totalorder %s15, 1
      %p58 = por %p56, %p57
      %p59 = scmp.ne.s32.totalorder %s51, %s54
      %p60 = scmp.eq.s32.totalorder %s15, 0
      %p61 = por %p59, %p60
      %p62 = scmp.ne.s32.totalorder %s51, %s54
      %p63 = scmp.eq.s32.totalorder %s20, 1
      %p64 = por %p62, %p63
      %p65 = scmp.ne.s32.totalorder %s54, %s55
      %p66 = scmp.eq.s32.totalorder %s20, 0
      %p67 = por %p65, %p66
      %p68 = scmp.ne.s32.totalorder %s54, %s55
      %p69 = scmp.eq.s32.totalorder %s21, 1
      %p70 = por %p68, %p69
      %p72 = scmp.ne.s32.totalorder %s55, %s71
      %p73 = scmp.eq.s32.totalorder %s21, 0
      %p74 = por %p72, %p73
      %s75 = ssub.s32 %s15, %s22
      %p76 = scmp.eq.s32.totalorder %s75, 0
      %s78 = sadd.s32 %s77, 1
      %s79 = scalar_select %p76, %s77, %s78
      %p82 = pneg %p76
      %p83 = scmp.eq.s32.totalorder %s15, 1
      %p84 = por %p82, %p83
      %p85 = scmp.ne.s32.totalorder %s77, %s80
      %p86 = scmp.eq.s32.totalorder %s15, 0
      %p87 = por %p85, %p86
      %p88 = scmp.ne.s32.totalorder %s77, %s80
      %p89 = scmp.eq.s32.totalorder %s20, 1
      %p90 = por %p88, %p89
      %p91 = scmp.ne.s32.totalorder %s80, %s81
      %p92 = scmp.eq.s32.totalorder %s20, 0
      %p93 = por %p91, %p92
      %p94 = scmp.ne.s32.totalorder %s80, %s81
      %p95 = scmp.eq.s32.totalorder %s21, 1
      %p96 = por %p94, %p95
      %p98 = scmp.ne.s32.totalorder %s81, %s97
      %p99 = scmp.eq.s32.totalorder %s21, 0
      %p100 = por %p98, %p99
      %s101 = ssub.s32 %s15, %s22
      %p102 = scmp.eq.s32.totalorder %s101, 0
      %s104 = sadd.s32 %s103, 1
      %s105 = scalar_select %p102, %s103, %s104
      %p108 = pneg %p102
      %p109 = scmp.eq.s32.totalorder %s15, 1
      %p110 = por %p108, %p109
      %p111 = scmp.ne.s32.totalorder %s103, %s106
      %p112 = scmp.eq.s32.totalorder %s15, 0
      %p113 = por %p111, %p112
      %p114 = scmp.ne.s32.totalorder %s103, %s106
      %p115 = scmp.eq.s32.totalorder %s20, 1
      %p116 = por %p114, %p115
      %p117 = scmp.ne.s32.totalorder %s106, %s107
      %p118 = scmp.eq.s32.totalorder %s20, 0
      %p119 = por %p117, %p118
      %p120 = scmp.ne.s32.totalorder %s106, %s107
      %p121 = scmp.eq.s32.totalorder %s21, 1
      %p122 = por %p120, %p121
      %p124 = scmp.ne.s32.totalorder %s107, %s123
      %p125 = scmp.eq.s32.totalorder %s21, 0
      %p126 = por %p124, %p125
      %p127 = scmp.le.s32.totalorder 1, %s15
      %p128 = scmp.lt.s32.totalorder %s15, 3
      %p129 = pnand %p127, %p128
      %p130 = pneg %p129
      // Predicated region
      $region9: #{tpu_custom_call.1} parent=5 // pred_check
        _
      $region10: #{tpu_custom_call.1} parent=5 // pred_check_branch
        %132 = sbr.rel (%p129) target = $region12
      $region11: #{tpu_custom_call.1} parent=5 // pred_region
        %s133 = ssub.s32 %s15, 1
      $region12: #{tpu_custom_call.1} parent=5 // pred_fallthru
        _
      %p134 = scmp.lt.s32.totalorder %s15, 2
      // Predicated region
      $region13: #{tpu_custom_call.1} parent=5 // pred_check
        %p135 = pneg %p134
      $region14: #{tpu_custom_call.1} parent=5 // pred_check_branch
        %137 = sbr.rel (%p135) target = $region16
      $region15: #{tpu_custom_call.1} parent=5 // pred_region
        // Predicated region
        $region17: #{tpu_custom_call.1} parent=15 // pred_check
          %p138 = pneg %p35
        $region18: #{tpu_custom_call.1} parent=15 // pred_check_branch
          %140 = sbr.rel (%p138) target = $region20
        $region19: #{tpu_custom_call.1} parent=15 // pred_region
          %s141 = sand.u32 %s25, 1
          %s142 = scalar_lea.sflag [#allocation5], %s141
          %s143 = sand.u32 %s25, 1
          %s144 = smul.addr %s143, 16
          %s145 = scalar_lea.vmem [#allocation4], %s144
          %147 = vsyncadd %s142, 0
          %s148 = smul.addr %s15, 4
          %s149 = smul.addr %s148, 4
          %s150 = scalar_lea.hbm %s0, %s149
          %s151 = sshll.u32 %s150, 4
          %s152 = int_to_ptr.hbm [resolvable:$true] %s151
          %s153 = sshll.u32 %s145, 4
          %s154 = int_to_ptr.vmem [resolvable:$true] %s153
          %159 = dma.hbm_to_vmem [thread:$0]  %s152, 256, %s154, %s142, 128, 128, 8
        $region20: #{tpu_custom_call.1} parent=15 // pred_fallthru
          _
        // Predicated region
        $region21: #{tpu_custom_call.1} parent=15 // pred_check
          %p160 = pneg %p61
        $region22: #{tpu_custom_call.1} parent=15 // pred_check_branch
          %162 = sbr.rel (%p160) target = $region24
        $region23: #{tpu_custom_call.1} parent=15 // pred_region
          %p163 = scmp.lt.s32.totalorder %s15, 1
          %s164 = scalar_select %p163, %s15, 1
          %s165 = smul.addr %s164, 8
          %s166 = scalar_lea.vmem %s1, %s165
        $region24: #{tpu_custom_call.1} parent=15 // pred_fallthru
          _
        // Predicated region
        $region25: #{tpu_custom_call.1} parent=15 // pred_check
          %p167 = pneg %p87
        $region26: #{tpu_custom_call.1} parent=15 // pred_check_branch
          %169 = sbr.rel (%p167) target = $region28
        $region27: #{tpu_custom_call.1} parent=15 // pred_region
          %p170 = scmp.lt.s32.totalorder %s15, 1
          %s171 = scalar_select %p170, %s15, 1
          %s172 = smul.addr %s171, 8
          %s173 = scalar_lea.vmem %s2, %s172
        $region28: #{tpu_custom_call.1} parent=15 // pred_fallthru
          _
      $region16: #{tpu_custom_call.1} parent=5 // pred_fallthru
        _
      %p174 = scmp.le.s32.totalorder 1, %s15
      %p175 = scmp.lt.s32.totalorder %s15, 3
      %p176 = pnand %p174, %p175
      %p177 = pneg %p176
      // Predicated region
      $region29: #{tpu_custom_call.1} parent=5 // pred_check
        _
      $region30: #{tpu_custom_call.1} parent=5 // pred_check_branch
        %179 = sbr.rel (%p176) target = $region32
      $region31: #{tpu_custom_call.1} parent=5 // pred_region
        %s180 = ssub.s32 %s15, 1
        %s181 = sand.u32 %s28, 1
        %s182 = scalar_lea.sflag [#allocation5], %s181
        %s183 = sand.u32 %s28, 1
        %s184 = smul.addr %s183, 16
        %s185 = scalar_lea.vmem [#allocation4], %s184
        // Predicated region
        $region33: #{tpu_custom_call.1} parent=31 // pred_check
          %p186 = pneg %p41
        $region34: #{tpu_custom_call.1} parent=31 // pred_check_branch
          %188 = sbr.rel (%p186) target = $region36
        $region35: #{tpu_custom_call.1} parent=31 // pred_region
          %190 = dma.done %s182, 256
        $region36: #{tpu_custom_call.1} parent=31 // pred_fallthru
          _
        %s191 = sand.u32 %s28, 1
        %s192 = scalar_lea.sflag [#allocation5], %s191
        %s193 = sand.u32 %s28, 1
        %s194 = smul.addr %s193, 16
        %s195 = scalar_lea.vmem [#allocation4], %s194
        %p196 = pneg %p41
        %p197 = pneg %p38
        %p198 = scmp.lt.s32.totalorder %s20, 1
        %s199 = scalar_select %p198, %s20, 1
        %s200 = smul.addr %s199, 8
        %s201 = scalar_lea.vmem %s1, %s200
        %p202 = pneg %p67
        %p203 = pneg %p64
        %p204 = scmp.lt.s32.totalorder %s20, 1
        %s205 = scalar_select %p204, %s20, 1
        %s206 = smul.addr %s205, 8
        %s207 = scalar_lea.vmem %s2, %s206
        %p208 = pneg %p93
        %p209 = pneg %p90
        %p210 = pneg %p119
        %p211 = pneg %p116
        %s212 = sand.u32 %s106, 1
        %s213 = scalar_lea.sflag [#allocation6], %s212
        %s214 = sand.u32 %s106, 1
        %s215 = smul.addr %s214, 32
        %s216 = scalar_lea.vmem [#allocation7], %s215
        %p217 = scmp.lt.s32.totalorder %s20, 1
        %s218 = scalar_select %p217, %s20, 1
        %s219 = smul.addr %s218, 8
        %s220 = scalar_lea.vmem %s1, %s219
        %p221 = scmp.lt.s32.totalorder %s20, 1
        %s222 = scalar_select %p221, %s20, 1
        %s223 = smul.addr %s222, 8
        %s224 = scalar_lea.vmem %s2, %s223
        %v226 = vld [vmem:[%s185] sm:$0xff]
        %227 = vst [vmem:[#allocation2] sm:$0xff] %v226
        %s228 = scalar_lea.vmem %s185, 8 [#allocation4]
        %v229 = vld [vmem:[%s228] sm:$0xff]
        %230 = vst [vmem:[#allocation2 + $0x8] sm:$0xff] %v229
        %231 = vst [vmem:[#allocation2 + $0x10] sm:$0xf] 0.0
        %v232 = vld [vmem:[#allocation2] sm:$0xff]
        %v233 = vld [vmem:[#allocation2 + $0x8] sm:$0xff]
        %236 = vst [vmem:[#allocation1] ss:$2 sm:$0xff] %v232
        %s237 = scalar_lea.vmem [#allocation1], 16
        %238 = vst [vmem:[%s237] ss:$2 sm:$0xff] %v233
        %v239 = vld.sshfl [vmem:[#allocation1] sm:$0xff pattern:$0x75316420]
        %v240 = vld.sshfl [vmem:[#allocation1 + $0x8] sm:$0xff pattern:$0x75316420]
        %v241 = vld.sshfl [vmem:[#allocation1 + $0x10] sm:$0xff pattern:$0x75316420]
        %v242 = vld.sshfl [vmem:[#allocation1 + $0x18] sm:$0xff pattern:$0x75316420]
        %247 = vst [vmem:[#allocation3] sm:$0xf] %v239
        %248 = vst [vmem:[#allocation3 + $0x8] sm:$0xf] %v240
        %249 = vst [vmem:[#allocation3 + $0x10] sm:$0xf] %v241
        %250 = vst [vmem:[#allocation3 + $0x18] sm:$0xf] %v242
        %v251 = vld [vmem:[#allocation2] sm:$0xff]
        %v252 = vld [vmem:[#allocation2 + $0x8] sm:$0xff]
        %v253 = vld [vmem:[#allocation2 + $0x10] sm:$0xf]
        %s257 = scalar_lea.vmem [#allocation1], 1
        %258 = vst [vmem:[%s257] ss:$2 sm:$0xff] %v251
        %s259 = scalar_lea.vmem [#allocation1], 17
        %260 = vst [vmem:[%s259] ss:$2 sm:$0xff] %v252
        %s261 = scalar_lea.vmem [#allocation1], 33
        %262 = vst [vmem:[%s261] ss:$2 sm:$0xff] %v253
        %v263 = vld.sshfl [vmem:[#allocation1] sm:$0xff pattern:$0x75316420]
        %v264 = vld.sshfl [vmem:[#allocation1 + $0x8] sm:$0xff pattern:$0x75316420]
        %v265 = vld.sshfl [vmem:[#allocation1 + $0x10] sm:$0xff pattern:$0x75316420]
        %v266 = vld.sshfl [vmem:[#allocation1 + $0x18] sm:$0xff pattern:$0x75316420]
        %v267 = vld.sshfl [vmem:[#allocation1 + $0x20] sm:$0xff pattern:$0x75316420]
        %268 = vrot.lane.b32.xlu0 %v263, 127
        %v269 = vpop.permute.xlu0 %268
        %270 = vrot.lane.b32.xlu0 %v264, 127
        %v271 = vpop.permute.xlu0 %270
        %272 = vrot.lane.b32.xlu0 %v265, 127
        %v273 = vpop.permute.xlu0 %272
        %274 = vrot.lane.b32.xlu0 %v266, 127
        %v275 = vpop.permute.xlu0 %274
        %276 = vrot.lane.b32.xlu0 %v267, 127
        %v277 = vpop.permute.xlu0 %276
        %vm278 = vcmask 1039360
        %v279 = vsel %vm278, %v269, %v271
        %v280 = vsel %vm278, %v271, %v273
        %v281 = vsel %vm278, %v273, %v275
        %v282 = vsel %vm278, %v275, %v277
        %287 = vst [vmem:[#allocation3] sm:$0xf0] %v279
        %288 = vst [vmem:[#allocation3 + $0x8] sm:$0xf0] %v280
        %289 = vst [vmem:[#allocation3 + $0x10] sm:$0xf0] %v281
        %290 = vst [vmem:[#allocation3 + $0x18] sm:$0xf0] %v282
        %v291 = vld [vmem:[#allocation2] sm:$0xff]
        %v292 = vld [vmem:[#allocation2 + $0x8] sm:$0xff]
        %v293 = vld [vmem:[#allocation2 + $0x10] sm:$0xf]
        %297 = vst [vmem:[#allocation1] ss:$2 sm:$0xff] %v291
        %s298 = scalar_lea.vmem [#allocation1], 16
        %299 = vst [vmem:[%s298] ss:$2 sm:$0xff] %v292
        %s300 = scalar_lea.vmem [#allocation1], 32
        %301 = vst [vmem:[%s300] ss:$2 sm:$0xff] %v293
        %v302 = vld.sshfl [vmem:[#allocation1] sm:$0xff pattern:$0x75316420]
        %v303 = vld.sshfl [vmem:[#allocation1 + $0x8] sm:$0xff pattern:$0x75316420]
        %v304 = vld.sshfl [vmem:[#allocation1 + $0x10] sm:$0xff pattern:$0x75316420]
        %v305 = vld.sshfl [vmem:[#allocation1 + $0x18] sm:$0xff pattern:$0x75316420]
        %v306 = vld.sshfl [vmem:[#allocation1 + $0x20] sm:$0xff pattern:$0x75316420]
        %307 = vrot.lane.b32.xlu0 %v302, 126
        %v308 = vpop.permute.xlu0 %307
        %309 = vrot.lane.b32.xlu0 %v303, 126
        %v310 = vpop.permute.xlu0 %309
        %311 = vrot.lane.b32.xlu0 %v304, 126
        %v312 = vpop.permute.xlu0 %311
        %313 = vrot.lane.b32.xlu0 %v305, 126
        %v314 = vpop.permute.xlu0 %313
        %315 = vrot.lane.b32.xlu0 %v306, 126
        %v316 = vpop.permute.xlu0 %315
        %vm317 = vcmask 1031168
        %v318 = vsel %vm317, %v308, %v310
        %v319 = vsel %vm317, %v310, %v312
        %v320 = vsel %vm317, %v312, %v314
        %v321 = vsel %vm317, %v314, %v316
        %326 = vst [vmem:[#allocation3 + $0x20] sm:$0xf] %v318
        %327 = vst [vmem:[#allocation3 + $0x28] sm:$0xf] %v319
        %328 = vst [vmem:[#allocation3 + $0x30] sm:$0xf] %v320
        %329 = vst [vmem:[#allocation3 + $0x38] sm:$0xf] %v321
        %v330 = vld [vmem:[#allocation2] sm:$0xff]
        %v331 = vld [vmem:[#allocation2 + $0x8] sm:$0xff]
        %v332 = vld [vmem:[#allocation2 + $0x10] sm:$0xf]
        %s336 = scalar_lea.vmem [#allocation1], 1
        %337 = vst [vmem:[%s336] ss:$2 sm:$0xff] %v330
        %s338 = scalar_lea.vmem [#allocation1], 17
        %339 = vst [vmem:[%s338] ss:$2 sm:$0xff] %v331
        %s340 = scalar_lea.vmem [#allocation1], 33
        %341 = vst [vmem:[%s340] ss:$2 sm:$0xff] %v332
        %v342 = vld.sshfl [vmem:[#allocation1] sm:$0xff pattern:$0x75316420]
        %v343 = vld.sshfl [vmem:[#allocation1 + $0x8] sm:$0xff pattern:$0x75316420]
        %v344 = vld.sshfl [vmem:[#allocation1 + $0x10] sm:$0xff pattern:$0x75316420]
        %v345 = vld.sshfl [vmem:[#allocation1 + $0x18] sm:$0xff pattern:$0x75316420]
        %v346 = vld.sshfl [vmem:[#allocation1 + $0x20] sm:$0xff pattern:$0x75316420]
        %347 = vrot.lane.b32.xlu0 %v342, 112
        %v348 = vpop.permute.xlu0 %347
        %349 = vrot.lane.b32.xlu0 %v343, 112
        %v350 = vpop.permute.xlu0 %349
        %351 = vrot.lane.b32.xlu0 %v344, 112
        %v352 = vpop.permute.xlu0 %351
        %353 = vrot.lane.b32.xlu0 %v345, 112
        %v354 = vpop.permute.xlu0 %353
        %355 = vrot.lane.b32.xlu0 %v346, 112
        %v356 = vpop.permute.xlu0 %355
        %vm357 = vcmask 916480
        %v358 = vsel %vm357, %v348, %v350
        %v359 = vsel %vm357, %v350, %v352
        %v360 = vsel %vm357, %v352, %v354
        %v361 = vsel %vm357, %v354, %v356
        %366 = vst [vmem:[#allocation3 + $0x20] sm:$0xf0] %v358
        %367 = vst [vmem:[#allocation3 + $0x28] sm:$0xf0] %v359
        %368 = vst [vmem:[#allocation3 + $0x30] sm:$0xf0] %v360
        %369 = vst [vmem:[#allocation3 + $0x38] sm:$0xf0] %v361
        %v370 = vld [vmem:[#allocation2] sm:$0xff]
        %v371 = vld [vmem:[#allocation2 + $0x8] sm:$0xff]
        %v372 = vld [vmem:[#allocation2 + $0x10] sm:$0xf]
        %376 = vst [vmem:[#allocation1] ss:$2 sm:$0xff] %v370
        %s377 = scalar_lea.vmem [#allocation1], 16
        %378 = vst [vmem:[%s377] ss:$2 sm:$0xff] %v371
        %s379 = scalar_lea.vmem [#allocation1], 32
        %380 = vst [vmem:[%s379] ss:$2 sm:$0xff] %v372
        %v381 = vld.sshfl [vmem:[#allocation1] sm:$0xff pattern:$0x75316420]
        %v382 = vld.sshfl [vmem:[#allocation1 + $0x8] sm:$0xff pattern:$0x75316420]
        %v383 = vld.sshfl [vmem:[#allocation1 + $0x10] sm:$0xff pattern:$0x75316420]
        %v384 = vld.sshfl [vmem:[#allocation1 + $0x18] sm:$0xff pattern:$0x75316420]
        %v385 = vld.sshfl [vmem:[#allocation1 + $0x20] sm:$0xff pattern:$0x75316420]
        %386 = vrot.lane.b32.xlu0 %v381, 111
        %v387 = vpop.permute.xlu0 %386
        %388 = vrot.lane.b32.xlu0 %v382, 111
        %v389 = vpop.permute.xlu0 %388
        %390 = vrot.lane.b32.xlu0 %v383, 111
        %v391 = vpop.permute.xlu0 %390
        %392 = vrot.lane.b32.xlu0 %v384, 111
        %v393 = vpop.permute.xlu0 %392
        %394 = vrot.lane.b32.xlu0 %v385, 111
        %v395 = vpop.permute.xlu0 %394
        %vm396 = vcmask 908288
        %v397 = vsel %vm396, %v387, %v389
        %v398 = vsel %vm396, %v389, %v391
        %v399 = vsel %vm396, %v391, %v393
        %v400 = vsel %vm396, %v393, %v395
        %405 = vst [vmem:[#allocation3 + $0x40] sm:$0xf] %v397
        %406 = vst [vmem:[#allocation3 + $0x48] sm:$0xf] %v398
        %407 = vst [vmem:[#allocation3 + $0x50] sm:$0xf] %v399
        %408 = vst [vmem:[#allocation3 + $0x58] sm:$0xf] %v400
        %v409 = vld [vmem:[#allocation2] sm:$0xff]
        %v410 = vld [vmem:[#allocation2 + $0x8] sm:$0xff]
        %v411 = vld [vmem:[#allocation2 + $0x10] sm:$0xf]
        %s415 = scalar_lea.vmem [#allocation1], 1
        %416 = vst [vmem:[%s415] ss:$2 sm:$0xff] %v409
        %s417 = scalar_lea.vmem [#allocation1], 17
        %418 = vst [vmem:[%s417] ss:$2 sm:$0xff] %v410
        %s419 = scalar_lea.vmem [#allocation1], 33
        %420 = vst [vmem:[%s419] ss:$2 sm:$0xff] %v411
        %v421 = vld.sshfl [vmem:[#allocation1] sm:$0xff pattern:$0x75316420]
        %v422 = vld.sshfl [vmem:[#allocation1 + $0x8] sm:$0xff pattern:$0x75316420]
        %v423 = vld.sshfl [vmem:[#allocation1 + $0x10] sm:$0xff pattern:$0x75316420]
        %v424 = vld.sshfl [vmem:[#allocation1 + $0x18] sm:$0xff pattern:$0x75316420]
        %v425 = vld.sshfl [vmem:[#allocation1 + $0x20] sm:$0xff pattern:$0x75316420]
        %426 = vrot.lane.b32.xlu0 %v421, 110
        %v427 = vpop.permute.xlu0 %426
        %428 = vrot.lane.b32.xlu0 %v422, 110
        %v429 = vpop.permute.xlu0 %428
        %430 = vrot.lane.b32.xlu0 %v423, 110
        %v431 = vpop.permute.xlu0 %430
        %432 = vrot.lane.b32.xlu0 %v424, 110
        %v433 = vpop.permute.xlu0 %432
        %434 = vrot.lane.b32.xlu0 %v425, 110
        %v435 = vpop.permute.xlu0 %434
        %vm436 = vcmask 900096
        %v437 = vsel %vm436, %v427, %v429
        %v438 = vsel %vm436, %v429, %v431
        %v439 = vsel %vm436, %v431, %v433
        %v440 = vsel %vm436, %v433, %v435
        %445 = vst [vmem:[#allocation3 + $0x40] sm:$0xf0] %v437
        %446 = vst [vmem:[#allocation3 + $0x48] sm:$0xf0] %v438
        %447 = vst [vmem:[#allocation3 + $0x50] sm:$0xf0] %v439
        %448 = vst [vmem:[#allocation3 + $0x58] sm:$0xf0] %v440
        %v449 = vld [vmem:[#allocation2] sm:$0xff]
        %v450 = vld [vmem:[#allocation2 + $0x8] sm:$0xff]
        %v451 = vld [vmem:[#allocation2 + $0x10] sm:$0xf]
        %455 = vst [vmem:[#allocation1] ss:$2 sm:$0xff] %v449
        %s456 = scalar_lea.vmem [#allocation1], 16
        %457 = vst [vmem:[%s456] ss:$2 sm:$0xff] %v450
        %s458 = scalar_lea.vmem [#allocation1], 32
        %459 = vst [vmem:[%s458] ss:$2 sm:$0xff] %v451
        %v460 = vld.sshfl [vmem:[#allocation1] sm:$0xff pattern:$0x75316420]
        %v461 = vld.sshfl [vmem:[#allocation1 + $0x8] sm:$0xff pattern:$0x75316420]
        %v462 = vld.sshfl [vmem:[#allocation1 + $0x10] sm:$0xff pattern:$0x75316420]
        %v463 = vld.sshfl [vmem:[#allocation1 + $0x18] sm:$0xff pattern:$0x75316420]
        %v464 = vld.sshfl [vmem:[#allocation1 + $0x20] sm:$0xff pattern:$0x75316420]
        %465 = vrot.lane.b32.xlu0 %v460, 96
        %v466 = vpop.permute.xlu0 %465
        %467 = vrot.lane.b32.xlu0 %v461, 96
        %v468 = vpop.permute.xlu0 %467
        %469 = vrot.lane.b32.xlu0 %v462, 96
        %v470 = vpop.permute.xlu0 %469
        %471 = vrot.lane.b32.xlu0 %v463, 96
        %v472 = vpop.permute.xlu0 %471
        %473 = vrot.lane.b32.xlu0 %v464, 96
        %v474 = vpop.permute.xlu0 %473
        %vm475 = vcmask 785408
        %v476 = vsel %vm475, %v466, %v468
        %v477 = vsel %vm475, %v468, %v470
        %v478 = vsel %vm475, %v470, %v472
        %v479 = vsel %vm475, %v472, %v474
        %484 = vst [vmem:[#allocation3 + $0x60] sm:$0xf] %v476
        %485 = vst [vmem:[#allocation3 + $0x68] sm:$0xf] %v477
        %486 = vst [vmem:[#allocation3 + $0x70] sm:$0xf] %v478
        %487 = vst [vmem:[#allocation3 + $0x78] sm:$0xf] %v479
        %v488 = vld [vmem:[#allocation2] sm:$0xff]
        %v489 = vld [vmem:[#allocation2 + $0x8] sm:$0xff]
        %v490 = vld [vmem:[#allocation2 + $0x10] sm:$0xf]
        %s494 = scalar_lea.vmem [#allocation1], 1
        %495 = vst [vmem:[%s494] ss:$2 sm:$0xff] %v488
        %s496 = scalar_lea.vmem [#allocation1], 17
        %497 = vst [vmem:[%s496] ss:$2 sm:$0xff] %v489
        %s498 = scalar_lea.vmem [#allocation1], 33
        %499 = vst [vmem:[%s498] ss:$2 sm:$0xff] %v490
        %v500 = vld.sshfl [vmem:[#allocation1] sm:$0xff pattern:$0x75316420]
        %v501 = vld.sshfl [vmem:[#allocation1 + $0x8] sm:$0xff pattern:$0x75316420]
        %v502 = vld.sshfl [vmem:[#allocation1 + $0x10] sm:$0xff pattern:$0x75316420]
        %v503 = vld.sshfl [vmem:[#allocation1 + $0x18] sm:$0xff pattern:$0x75316420]
        %v504 = vld.sshfl [vmem:[#allocation1 + $0x20] sm:$0xff pattern:$0x75316420]
        %505 = vrot.lane.b32.xlu0 %v500, 95
        %v506 = vpop.permute.xlu0 %505
        %507 = vrot.lane.b32.xlu0 %v501, 95
        %v508 = vpop.permute.xlu0 %507
        %509 = vrot.lane.b32.xlu0 %v502, 95
        %v510 = vpop.permute.xlu0 %509
        %511 = vrot.lane.b32.xlu0 %v503, 95
        %v512 = vpop.permute.xlu0 %511
        %513 = vrot.lane.b32.xlu0 %v504, 95
        %v514 = vpop.permute.xlu0 %513
        %vm515 = vcmask 777216
        %v516 = vsel %vm515, %v506, %v508
        %v517 = vsel %vm515, %v508, %v510
        %v518 = vsel %vm515, %v510, %v512
        %v519 = vsel %vm515, %v512, %v514
        %524 = vst [vmem:[#allocation3 + $0x60] sm:$0xf0] %v516
        %525 = vst [vmem:[#allocation3 + $0x68] sm:$0xf0] %v517
        %526 = vst [vmem:[#allocation3 + $0x70] sm:$0xf0] %v518
        %527 = vst [vmem:[#allocation3 + $0x78] sm:$0xf0] %v519
        %v528 = vld [vmem:[#allocation2] sm:$0xff]
        %v529 = vld [vmem:[#allocation2 + $0x8] sm:$0xff]
        %v530 = vld [vmem:[#allocation2 + $0x10] sm:$0xf]
        %534 = vst [vmem:[#allocation1] ss:$2 sm:$0xff] %v528
        %s535 = scalar_lea.vmem [#allocation1], 16
        %536 = vst [vmem:[%s535] ss:$2 sm:$0xff] %v529
        %s537 = scalar_lea.vmem [#allocation1], 32
        %538 = vst [vmem:[%s537] ss:$2 sm:$0xff] %v530
        %v539 = vld.sshfl [vmem:[#allocation1] sm:$0xff pattern:$0x75316420]
        %v540 = vld.sshfl [vmem:[#allocation1 + $0x8] sm:$0xff pattern:$0x75316420]
        %v541 = vld.sshfl [vmem:[#allocation1 + $0x10] sm:$0xff pattern:$0x75316420]
        %v542 = vld.sshfl [vmem:[#allocation1 + $0x18] sm:$0xff pattern:$0x75316420]
        %v543 = vld.sshfl [vmem:[#allocation1 + $0x20] sm:$0xff pattern:$0x75316420]
        %544 = vrot.lane.b32.xlu0 %v539, 94
        %v545 = vpop.permute.xlu0 %544
        %546 = vrot.lane.b32.xlu0 %v540, 94
        %v547 = vpop.permute.xlu0 %546
        %548 = vrot.lane.b32.xlu0 %v541, 94
        %v549 = vpop.permute.xlu0 %548
        %550 = vrot.lane.b32.xlu0 %v542, 94
        %v551 = vpop.permute.xlu0 %550
        %552 = vrot.lane.b32.xlu0 %v543, 94
        %v553 = vpop.permute.xlu0 %552
        %vm554 = vcmask 769024
        %v555 = vsel %vm554, %v545, %v547
        %v556 = vsel %vm554, %v547, %v549
        %v557 = vsel %vm554, %v549, %v551
        %v558 = vsel %vm554, %v551, %v553
        %563 = vst [vmem:[#allocation3 + $0x80] sm:$0xf] %v555
        %564 = vst [vmem:[#allocation3 + $0x88] sm:$0xf] %v556
        %565 = vst [vmem:[#allocation3 + $0x90] sm:$0xf] %v557
        %566 = vst [vmem:[#allocation3 + $0x98] sm:$0xf] %v558
        %v567 = vld [vmem:[%s220] sm:$0xff]
        %v568 = vpack.c.bf16 %v567, %v567
        %v569 = vld [vmem:[#allocation3] sm:$0xff]
        %v570 = vld [vmem:[#allocation3 + $0x8] sm:$0xff]
        %v571 = vld [vmem:[#allocation3 + $0x10] sm:$0xff]
        %v572 = vld [vmem:[#allocation3 + $0x18] sm:$0xff]
        %v573 = vld [vmem:[#allocation3 + $0x20] sm:$0xff]
        %v574 = vld [vmem:[#allocation3 + $0x28] sm:$0xff]
        %v575 = vld [vmem:[#allocation3 + $0x30] sm:$0xff]
        %v576 = vld [vmem:[#allocation3 + $0x38] sm:$0xff]
        %v577 = vld [vmem:[#allocation3 + $0x40] sm:$0xff]
        %v578 = vld [vmem:[#allocation3 + $0x48] sm:$0xff]
        %v579 = vld [vmem:[#allocation3 + $0x50] sm:$0xff]
        %v580 = vld [vmem:[#allocation3 + $0x58] sm:$0xff]
        %v581 = vld [vmem:[#allocation3 + $0x60] sm:$0xff]
        %v582 = vld [vmem:[#allocation3 + $0x68] sm:$0xff]
        %v583 = vld [vmem:[#allocation3 + $0x70] sm:$0xff]
        %v584 = vld [vmem:[#allocation3 + $0x78] sm:$0xff]
        %v585 = vld [vmem:[#allocation3 + $0x80] sm:$0xf]
        %v586 = vld [vmem:[#allocation3 + $0x88] sm:$0xf]
        %v587 = vld [vmem:[#allocation3 + $0x90] sm:$0xf]
        %v588 = vld [vmem:[#allocation3 + $0x98] sm:$0xf]
        %v589 = vpack.c.bf16 %v573, %v569
        %v590 = vpack.c.bf16 %v574, %v570
        %v591 = vpack.c.bf16 %v575, %v571
        %v592 = vpack.c.bf16 %v576, %v572
        %v593 = vpack.c.bf16 %v581, %v577
        %v594 = vpack.c.bf16 %v582, %v578
        %v595 = vpack.c.bf16 %v583, %v579
        %v596 = vpack.c.bf16 %v584, %v580
        %v597 = vpack.c.bf16 %v585, %v585
        %v598 = vpack.c.bf16 %v586, %v586
        %v599 = vpack.c.bf16 %v587, %v587
        %v600 = vpack.c.bf16 %v588, %v588
        %v601 = vld [vmem:[%s224] sm:$0xff]
        %603 = vset.pattern.permute.xlu0 0
        %604 = vperm.xlu0 %603, %v601
        %v605 = vpop.permute.xlu0 %604
        %vm607 = vcmask 293888
        %v609 = vsel %vm607, %v568, 0
        %vm611 = vcmask 1041408
        %v613 = vsel %vm611, %v597, 0
        %v616 = vsel %vm611, %v598, 0
        %v619 = vsel %vm611, %v599, 0
        %v622 = vsel %vm611, %v600, 0
        %624 = vmatpush.bf16.msra.mxu0 0
        %625 = vmatpush.bf16.msra.mxu0 0
        %626 = vmatpush.bf16.msra.mxu0 0
        %627 = vmatpush.bf16.msra.mxu0 0
        %628 = vmatpush.bf16.msra.mxu0 0
        %629 = vmatpush.bf16.msra.mxu0 %v613
        %630 = vmatpush.bf16.msra.mxu0 %v593
        %631 = vmatpush.bf16.msra.mxu0 %v589
        %632 = vmatmul.bf16.gmra.mxu0 %v609
        %v633 = vpop.f32.mrf.mxu0
        %v634 = vadd.f32 %v605, %v633
        %v635 = vpop.f32.mrf.mxu0
        %636 = vdwg.mxu0
        %637 = vmatpush.bf16.msra.mxu0 0
        %638 = vmatpush.bf16.msra.mxu0 0
        %639 = vmatpush.bf16.msra.mxu0 0
        %640 = vmatpush.bf16.msra.mxu0 0
        %641 = vmatpush.bf16.msra.mxu0 0
        %642 = vmatpush.bf16.msra.mxu0 %v616
        %643 = vmatpush.bf16.msra.mxu0 %v594
        %644 = vmatpush.bf16.msra.mxu0 %v590
        %645 = vmatmul.bf16.gmra.mxu0 %v609
        %v646 = vpop.f32.mrf.mxu0
        %v647 = vadd.f32 %v605, %v646
        %v648 = vpop.f32.mrf.mxu0
        %649 = vdwg.mxu0
        %650 = vmatpush.bf16.msra.mxu0 0
        %651 = vmatpush.bf16.msra.mxu0 0
        %652 = vmatpush.bf16.msra.mxu0 0
        %653 = vmatpush.bf16.msra.mxu0 0
        %654 = vmatpush.bf16.msra.mxu0 0
        %655 = vmatpush.bf16.msra.mxu0 %v619
        %656 = vmatpush.bf16.msra.mxu0 %v595
        %657 = vmatpush.bf16.msra.mxu0 %v591
        %658 = vmatmul.bf16.gmra.mxu0 %v609
        %v659 = vpop.f32.mrf.mxu0
        %v660 = vadd.f32 %v605, %v659
        %v661 = vpop.f32.mrf.mxu0
        %662 = vdwg.mxu0
        %663 = vmatpush.bf16.msra.mxu0 0
        %664 = vmatpush.bf16.msra.mxu0 0
        %665 = vmatpush.bf16.msra.mxu0 0
        %666 = vmatpush.bf16.msra.mxu0 0
        %667 = vmatpush.bf16.msra.mxu0 0
        %668 = vmatpush.bf16.msra.mxu0 %v622
        %669 = vmatpush.bf16.msra.mxu0 %v596
        %670 = vmatpush.bf16.msra.mxu0 %v592
        %671 = vmatmul.bf16.gmra.mxu0 %v609
        %v672 = vpop.f32.mrf.mxu0
        %v673 = vadd.f32 %v605, %v672
        %v674 = vpop.f32.mrf.mxu0
        %675 = vdwg.mxu0
        %676 = vst [vmem:[%s216] sm:$0xff] %v634
        %677 = vst [vmem:[%s216 + $0x8] sm:$0xff] %v647
        %678 = vst [vmem:[%s216 + $0x10] sm:$0xff] %v660
        %679 = vst [vmem:[%s216 + $0x18] sm:$0xff] %v673
        %s680 = sand.u32 %s106, 1
        %s681 = scalar_lea.sflag [#allocation6], %s680
        %s682 = sand.u32 %s106, 1
        %s683 = smul.addr %s682, 32
        %s684 = scalar_lea.vmem [#allocation7], %s683
        // Predicated region
        $region37: #{tpu_custom_call.1} parent=31 // pred_check
          %p685 = pneg %p116
        $region38: #{tpu_custom_call.1} parent=31 // pred_check_branch
          %687 = sbr.rel (%p685) target = $region40
        $region39: #{tpu_custom_call.1} parent=31 // pred_region
          %689 = vsyncadd %s681, 0
          %s690 = smul.addr %s20, 4
          %s691 = smul.addr %s690, 8
          %s692 = scalar_lea.hbm %s3, %s691
          %s694 = sshll.u32 %s684, 4
          %s695 = int_to_ptr.vmem [resolvable:$true] %s694
          %s696 = sshll.u32 %s692, 4
          %s697 = int_to_ptr.hbm [resolvable:$true] %s696
          %699 = dma.vmem_to_hbm [thread:$0]  %s695, 512, %s697, %s681
        $region40: #{tpu_custom_call.1} parent=31 // pred_fallthru
          _
      $region32: #{tpu_custom_call.1} parent=5 // pred_fallthru
        _
      %p700 = scmp.le.s32.totalorder 2, %s15
      // Predicated region
      $region41: #{tpu_custom_call.1} parent=5 // pred_check
        %p701 = pneg %p700
      $region42: #{tpu_custom_call.1} parent=5 // pred_check_branch
        %703 = sbr.rel (%p701) target = $region44
      $region43: #{tpu_custom_call.1} parent=5 // pred_region
        %s704 = ssub.s32 %s15, 2
        // Predicated region
        $region45: #{tpu_custom_call.1} parent=43 // pred_check
          %p705 = pneg %p122
        $region46: #{tpu_custom_call.1} parent=43 // pred_check_branch
          %707 = sbr.rel (%p705) target = $region48
        $region47: #{tpu_custom_call.1} parent=43 // pred_region
          %s708 = sand.u32 %s107, 1
          %s709 = scalar_lea.sflag [#allocation6], %s708
          %s710 = sand.u32 %s107, 1
          %s711 = smul.addr %s710, 32
          %s712 = scalar_lea.vmem [#allocation7], %s711
          %714 = dma.done %s709, 512
        $region48: #{tpu_custom_call.1} parent=43 // pred_fallthru
          _
      $region44: #{tpu_custom_call.1} parent=5 // pred_fallthru
        _
    $region6: #{tpu_custom_call.1} parent=1 // loop_footer
      %s19 = sadd.s32 1, %s15
    $region7: #{tpu_custom_call.1} parent=1 // loop_footer_branch
      %14 = sbr.rel target = $region3
    $region8: #{tpu_custom_call.1} parent=1 // loop_exit
      _
    %715 = vsyncpa [#allocation5], 1
    %s716 = scalar_lea.sflag [#allocation5], 1
    %717 = vsyncpa %s716, 1
    %718 = vsyncpa [#allocation6], 1
    %s719 = scalar_lea.sflag [#allocation6], 1
    %720 = vsyncpa %s719, 1

</llo_original>
